<compile_context>
chip_gen: v7x
topology: tpu7x:2x2x1
jax: 0.10.0
libtpu: 0.0.40
codegen_flags: <defaults>
</compile_context>

<pallas_src>
import functools

import jax
import jax.numpy as jnp
from jax.experimental import pallas as pl
from jax.experimental.pallas import tpu as pltpu


def _round_up(x: int, m: int) -> int:
    return (x + m - 1) // m * m


# ---------------------------------------------------------------------------
# Resident path: the whole (N, K) problem lives in VMEM, single invocation.
# ---------------------------------------------------------------------------
def _resident_kernel(q_ref, out_ref, *scratch, nb_iters, inv_eps, inv_k, inv_n):
    # Single f32 working buffer: the output ref itself when it is f32,
    # otherwise a dedicated VMEM scratch.
    w_ref = scratch[0] if scratch else out_ref

    # x0 = exp((Q - max Q) / eps); the constant factor exp(-max/eps) cancels in
    # the first column normalization (same argument as the reference's global
    # /sum_Q, which is therefore skipped as well).
    q = q_ref[...]
    m = jnp.max(q).astype(jnp.float32)               # max on the native dtype
    x = jnp.exp((q.astype(jnp.float32) - m) * inv_eps)
    w_ref[...] = x
    # Column sums for iteration 1, taken from the freshly produced values
    # (fused with the exp pass - no extra VMEM sweep).
    col = jnp.sum(x, axis=0, keepdims=True)                               # (1, K)

    for it in range(nb_iters):
        last = it == nb_iters - 1
        inv_col = jnp.where(col > 0.0,
                            pl.reciprocal(col, approx=False), 0.0) * inv_k
        # Row sums of the column-scaled array WITHOUT materializing it.
        row = jnp.sum(w_ref[...] * inv_col, axis=1, keepdims=True)        # (N, 1)
        inv_row = jnp.where(row > 0.0,
                            pl.reciprocal(row, approx=False), 0.0)
        if last:
            # Last /N cancels with the final *B; fuse scaling + cast + store.
            out_ref[...] = (w_ref[...] * inv_col * inv_row).astype(out_ref.dtype)
        else:
            inv_row = inv_row * inv_n
            w_new = w_ref[...] * inv_col * inv_row                        # one fused write
            w_ref[...] = w_new
            # Next iteration's column sums, fused with this write pass.
            col = jnp.sum(w_new, axis=0, keepdims=True)


# ---------------------------------------------------------------------------
# Row-tiled fallback (large N*K).  State factored as x0 * r * c:
#   c_t = 1 / (K * A_{t-1}),  A_{t-1,j} = sum_i x0_ij * r_{t-1,i}
#   r_t = 1 / (N * B_t),      B_{t,i}   = sum_j x0_ij * c_{t,j}
# with r_0 = 1 and the last iteration's 1/N dropped (cancels with the final *B).
# Only Q is streamed; exp((Q - m)/eps) is recomputed per pass.
# ---------------------------------------------------------------------------
def _tiled_stats_kernel(q_ref, m_ref, a_ref, c_scr, *, n, tile_n,
                        inv_eps, inv_k, inv_n):
    p = pl.program_id(0)          # phase: 0 = global max, 1..nb_iters = col-sum passes
    i = pl.program_id(1)          # row-tile index

    rows_left = n - i * tile_n
    row_ids = jax.lax.broadcasted_iota(jnp.int32, (tile_n, 1), 0)
    row_valid = row_ids < rows_left                                       # (tile_n, 1)

    @pl.when(jnp.logical_and(p == 0, i == 0))
    def _():
        m_ref[...] = jnp.full_like(m_ref, -jnp.inf)
        c_scr[...] = jnp.zeros_like(c_scr)

    @pl.when(p == 0)
    def _():
        qv = jnp.where(row_valid, q_ref[...].astype(jnp.float32), -jnp.inf)
        m_ref[...] = jnp.maximum(m_ref[...], jnp.max(qv))

    # Finish the previous phase's column step: c = 1 / (K * A)  (before reset).
    @pl.when(jnp.logical_and(p >= 2, i == 0))
    def _():
        a = a_ref[...]
        c_scr[...] = jnp.where(a > 0.0,
                               pl.reciprocal(a, approx=False), 0.0) * inv_k

    @pl.when(jnp.logical_and(p >= 1, i == 0))
    def _():
        a_ref[...] = jnp.zeros_like(a_ref)

    @pl.when(p >= 1)
    def _():
        x = jnp.exp((q_ref[...].astype(jnp.float32) - m_ref[...]) * inv_eps)
        # Row scalings r for this tile.  Phase 1 is the very first column step
        # of the reference, where the row scaling is still identity.
        b = jnp.sum(x * c_scr[...], axis=1, keepdims=True)                # (tile_n, 1)
        r = jnp.where(b > 0.0, pl.reciprocal(b, approx=False), 0.0) * inv_n
        r = jnp.where(p == 1, jnp.ones_like(r), r)
        # A_j += sum_i x_ij * r_i, with out-of-range rows masked out.
        contrib = jnp.where(row_valid, x * r, 0.0)
        a_ref[...] = a_ref[...] + jnp.sum(contrib, axis=0, keepdims=True)


def _tiled_apply_kernel(m_ref, a_ref, q_ref, out_ref, *, inv_eps, inv_k):
    x = jnp.exp((q_ref[...].astype(jnp.float32) - m_ref[...]) * inv_eps)
    a = a_ref[...]
    c = jnp.where(a > 0.0, pl.reciprocal(a, approx=False), 0.0) * inv_k   # (1, K)
    b = jnp.sum(x * c, axis=1, keepdims=True)                             # (tile_n, 1)
    r = jnp.where(b > 0.0, pl.reciprocal(b, approx=False), 0.0)           # last iter: *B cancels /N
    out_ref[...] = (x * c * r).astype(out_ref.dtype)


# ---------------------------------------------------------------------------
# Wrapper
# ---------------------------------------------------------------------------
def _vmem_capacity_bytes() -> int:
    try:
        cap = int(pltpu.get_tpu_info().vmem_capacity_bytes)
        if cap > 0:
            return cap
    except Exception:
        pass
    return 64 << 20  # conservative default: v7x per-TensorCore VMEM


@functools.partial(jax.jit,
                   static_argnames=("nb_iters", "epsilon", "force_tiled", "tile_rows"))
def sinkhorn_knopp(q: jax.Array, nb_iters: int = 3, epsilon: float = 0.05,
                   *, force_tiled: bool = False, tile_rows=None) -> jax.Array:
    """Pallas TPU implementation of SwAV Sinkhorn-Knopp.  q: (N, K) -> (N, K)."""
    assert q.ndim == 2
    assert nb_iters >= 1
    n, k = q.shape
    itemsize = jnp.dtype(q.dtype).itemsize
    is_f32 = jnp.dtype(q.dtype) == jnp.dtype(jnp.float32)

    inv_eps = float(1.0 / epsilon)
    inv_k = float(1.0 / k)
    inv_n = float(1.0 / n)

    cap = _vmem_capacity_bytes()
    budget = cap - (8 << 20)      # headroom for Mosaic internal scratch

    # Physical footprint of the resident path (Mosaic pads tiles to (8, 128)),
    # including one extra f32 array's worth of headroom for transient values.
    n_phys = _round_up(n, 8)
    k_phys = _round_up(k, 128)
    resident_bytes = n_phys * k_phys * (2 * itemsize + (0 if is_f32 else 4) + 4)

    # ------------------------------ resident path --------------------------
    if not force_tiled and resident_bytes <= budget:
        scratch_shapes = [] if is_f32 else [pltpu.VMEM((n, k), jnp.float32)]
        vmem_limit = int(min(max(resident_bytes + (4 << 20), 32 << 20),
                             cap - (4 << 20)))
        kernel = functools.partial(_resident_kernel, nb_iters=nb_iters,
                                   inv_eps=inv_eps, inv_k=inv_k, inv_n=inv_n)
        return pl.pallas_call(
            kernel,
            out_shape=jax.ShapeDtypeStruct((n, k), q.dtype),
            # Whole-array, unblocked VMEM residency (no grid -> no double buffer).
            in_specs=[pl.BlockSpec(memory_space=pltpu.MemorySpace.VMEM)],
            out_specs=pl.BlockSpec(memory_space=pltpu.MemorySpace.VMEM),
            scratch_shapes=scratch_shapes,
            input_output_aliases={0: 0},
            compiler_params=pltpu.CompilerParams(vmem_limit_bytes=vmem_limit),
            cost_estimate=pl.CostEstimate(
                flops=int((5 * nb_iters + 3) * n * k),
                transcendentals=int(n * k),
                bytes_accessed=int(2 * n * k * itemsize)),
        )(q)

    # ------------------------------ tiled fallback --------------------------
    if tile_rows is not None:
        tile_n = max(8, _round_up(int(tile_rows), 8))
    else:
        per_row = k * (4 * itemsize + 12)          # dbl-buffered in/out + f32 temps
        tile_n = int(budget // max(per_row, 1))
        tile_n = max(8, min(tile_n, 1024))
        tile_n = (tile_n // 8) * 8
    tile_n = min(tile_n, _round_up(n, 8))
    n_tiles = (n + tile_n - 1) // tile_n

    tiled_need = tile_n * k * (4 * itemsize + 16) + (2 << 20)
    vmem_limit = int(min(max(tiled_need, 32 << 20), cap - (4 << 20)))

    stats_kernel = functools.partial(_tiled_stats_kernel, n=n, tile_n=tile_n,
                                     inv_eps=inv_eps, inv_k=inv_k, inv_n=inv_n)
    m_out, a_out = pl.pallas_call(
        stats_kernel,
        out_shape=(jax.ShapeDtypeStruct((1, 1), jnp.float32),
                   jax.ShapeDtypeStruct((1, k), jnp.float32)),
        grid_spec=pltpu.PrefetchScalarGridSpec(
            num_scalar_prefetch=0,
            grid=(nb_iters + 1, n_tiles),
            in_specs=[pl.BlockSpec((tile_n, k), lambda p, i: (i, 0))],
            out_specs=[pl.BlockSpec((1, 1), lambda p, i: (0, 0)),
                       pl.BlockSpec((1, k), lambda p, i: (0, 0))],
            scratch_shapes=[pltpu.VMEM((1, k), jnp.float32)]),
        compiler_params=pltpu.CompilerParams(
            dimension_semantics=("arbitrary", "arbitrary"),
            vmem_limit_bytes=vmem_limit),
    )(q)

    apply_kernel = functools.partial(_tiled_apply_kernel,
                                     inv_eps=inv_eps, inv_k=inv_k)
    out = pl.pallas_call(
        apply_kernel,
        out_shape=jax.ShapeDtypeStruct((n, k), q.dtype),
        grid_spec=pltpu.PrefetchScalarGridSpec(
            num_scalar_prefetch=0,
            grid=(n_tiles,),
            in_specs=[pl.BlockSpec((1, 1), lambda i: (0, 0)),
                      pl.BlockSpec((1, k), lambda i: (0, 0)),
                      pl.BlockSpec((tile_n, k), lambda i: (i, 0))],
            out_specs=pl.BlockSpec((tile_n, k), lambda i: (i, 0))),
        compiler_params=pltpu.CompilerParams(
            dimension_semantics=("parallel",),
            vmem_limit_bytes=vmem_limit),
    )(m_out, a_out, q)
    return out


# ---------------------------------------------------------------------------
# Pure-JAX transcription of the PyTorch forward (single device), for checking.
# ---------------------------------------------------------------------------
def _reference(q: jax.Array, nb_iters: int = 3, epsilon: float = 0.05) -> jax.Array:
    n, k = q.shape
    b = n  # world_size == 1
    x = jnp.exp(q.astype(jnp.float32) / epsilon).T  # (K, N)
    x = x / jnp.sum(x)
    for _ in range(nb_iters):
        x = x / jnp.sum(x, axis=1, keepdims=True)
        x = x / k
        x = x / jnp.sum(x, axis=0, keepdims=True)
        x = x / b
    x = x * b
    return x.T.astype(q.dtype)


if __name__ == "__main__":
    key = jax.random.PRNGKey(0)

    # Shape implied by the module: (batch N, num_prototypes K).
    N, K = 8, 32
    q = jax.random.normal(key, (N, K), dtype=jnp.float32) * 0.1

    out = jax.block_until_ready(sinkhorn_knopp(q, nb_iters=3, epsilon=0.05))
    ref = _reference(q, nb_iters=3, epsilon=0.05)
    assert out.shape == (N, K)
    assert jnp.allclose(out, ref, atol=1e-5, rtol=1e-4), "mismatch vs reference (8, 32)"

    # Ragged shapes (no host-side pad/slice any more).
    for (n2, k2) in [(6, 200), (16, 128), (20, 384)]:
        q2 = jax.random.normal(jax.random.PRNGKey(1), (n2, k2), jnp.float32) * 0.1
        o2 = jax.block_until_ready(sinkhorn_knopp(q2, nb_iters=3, epsilon=0.05))
        r2 = _reference(q2, nb_iters=3, epsilon=0.05)
        assert o2.shape == (n2, k2)
        assert jnp.allclose(o2, r2, atol=1e-5, rtol=1e-4), f"mismatch vs reference {(n2, k2)}"

    # bf16 input path (f32 compute, fused cast on the final store).
    qb = (jax.random.normal(jax.random.PRNGKey(2), (8, 256), jnp.float32) * 0.1
          ).astype(jnp.bfloat16)
    ob = jax.block_until_ready(sinkhorn_knopp(qb, nb_iters=3, epsilon=0.05))
    rb = _reference(qb, nb_iters=3, epsilon=0.05)
    assert ob.shape == (8, 256)
    assert jnp.allclose(ob.astype(jnp.float32), rb.astype(jnp.float32),
                        atol=2e-3, rtol=5e-2), "mismatch vs reference bf16"

    # Row-tiled fallback (forced): multi-tile with a ragged last tile, and an
    # exactly-tiled case.
    for (n3, k3, tr) in [(20, 200, 8), (32, 384, 16)]:
        q3 = jax.random.normal(jax.random.PRNGKey(3), (n3, k3), jnp.float32) * 0.1
        o3 = jax.block_until_ready(
            sinkhorn_knopp(q3, nb_iters=3, epsilon=0.05,
                           force_tiled=True, tile_rows=tr))
        r3 = _reference(q3, nb_iters=3, epsilon=0.05)
        assert o3.shape == (n3, k3)
        assert jnp.allclose(o3, r3, atol=1e-5, rtol=5e-4), f"tiled mismatch {(n3, k3)}"

    print("KERNEL_OK")
</pallas_src>

<mosaic_0001>
module attributes {stable_mosaic.version = 11 : i64} {
  func.func @_resident_kernel(%arg0: memref<8x32xf32, #tpu.memory_space<vmem>>, %arg1: memref<8x32xf32, #tpu.memory_space<vmem>>) attributes {dimension_semantics = [], scalar_prefetch = 0 : i64, scratch_operands = 0 : i64, tpu.core_type = #tpu.core_type<tc>} {
    %c0 = arith.constant 0 : index
    %c0_0 = arith.constant 0 : index
    %0 = vector.load %arg0[%c0, %c0_0] : memref<8x32xf32, #tpu.memory_space<vmem>>, vector<8x32xf32>
    %1 = vector.shape_cast %0 : vector<8x32xf32> to vector<1x8x32xf32>
    %cst = arith.constant dense<0xFF800000> : vector<1xf32>
    %2 = vector.multi_reduction <maximumf>, %1, %cst [1, 2] : vector<1x8x32xf32> to vector<1xf32>
    %3 = vector.shape_cast %2 : vector<1xf32> to vector<1x1x1xf32>
    %4 = vector.extract %3[0, 0, 0] : f32 from vector<1x1x1xf32>
    %5 = vector.broadcast %4 : f32 to vector<8x32xf32>
    %6 = arith.subf %0, %5 : vector<8x32xf32>
    %cst_1 = arith.constant 2.000000e+01 : f32
    %7 = vector.broadcast %cst_1 : f32 to vector<8x32xf32>
    %8 = arith.mulf %6, %7 : vector<8x32xf32>
    %9 = math.exp %8 : vector<8x32xf32>
    %c0_2 = arith.constant 0 : index
    %c0_3 = arith.constant 0 : index
    %10 = vector.load %arg1[%c0_2, %c0_3] : memref<8x32xf32, #tpu.memory_space<vmem>>, vector<8x32xf32>
    tpu.vector_store %arg1[%c0_2, %c0_3], %9 {strides = array<i32>} : memref<8x32xf32, #tpu.memory_space<vmem>>, vector<8x32xf32>,
    %cst_4 = arith.constant dense<0.000000e+00> : vector<32xf32>
    %11 = vector.multi_reduction <add>, %9, %cst_4 [0] : vector<8x32xf32> to vector<32xf32>
    %12 = vector.shape_cast %11 : vector<32xf32> to vector<1x32xf32>
    %cst_5 = arith.constant 0.000000e+00 : f32
    %13 = vector.broadcast %cst_5 : f32 to vector<1x32xf32>
    %14 = arith.cmpf ogt, %12, %13 : vector<1x32xf32>
    %15 = tpu.reciprocal %12 : vector<1x32xf32> -> vector<1x32xf32>
    %cst_6 = arith.constant 0.000000e+00 : f32
    %16 = vector.broadcast %cst_6 : f32 to vector<1x32xf32>
    %17 = arith.select %14, %15, %16 : vector<1x32xi1>, vector<1x32xf32>
    %cst_7 = arith.constant 3.125000e-02 : f32
    %18 = vector.broadcast %cst_7 : f32 to vector<1x32xf32>
    %19 = arith.mulf %17, %18 : vector<1x32xf32>
    %c0_8 = arith.constant 0 : index
    %c0_9 = arith.constant 0 : index
    %20 = vector.load %arg1[%c0_8, %c0_9] : memref<8x32xf32, #tpu.memory_space<vmem>>, vector<8x32xf32>
    %21 = vector.broadcast %19 : vector<1x32xf32> to vector<8x32xf32>
    %22 = arith.mulf %20, %21 : vector<8x32xf32>
    %cst_10 = arith.constant dense<0.000000e+00> : vector<8xf32>
    %23 = vector.multi_reduction <add>, %22, %cst_10 [1] : vector<8x32xf32> to vector<8xf32>
    %24 = vector.shape_cast %23 : vector<8xf32> to vector<8x1xf32>
    %cst_11 = arith.constant 0.000000e+00 : f32
    %25 = vector.broadcast %cst_11 : f32 to vector<8x1xf32>
    %26 = arith.cmpf ogt, %24, %25 : vector<8x1xf32>
    %27 = tpu.reciprocal %24 : vector<8x1xf32> -> vector<8x1xf32>
    %cst_12 = arith.constant 0.000000e+00 : f32
    %28 = vector.broadcast %cst_12 : f32 to vector<8x1xf32>
    %29 = arith.select %26, %27, %28 : vector<8x1xi1>, vector<8x1xf32>
    %cst_13 = arith.constant 1.250000e-01 : f32
    %30 = vector.broadcast %cst_13 : f32 to vector<8x1xf32>
    %31 = arith.mulf %29, %30 : vector<8x1xf32>
    %c0_14 = arith.constant 0 : index
    %c0_15 = arith.constant 0 : index
    %32 = vector.load %arg1[%c0_14, %c0_15] : memref<8x32xf32, #tpu.memory_space<vmem>>, vector<8x32xf32>
    %33 = vector.broadcast %19 : vector<1x32xf32> to vector<8x32xf32>
    %34 = arith.mulf %32, %33 : vector<8x32xf32>
    %35 = vector.broadcast %31 : vector<8x1xf32> to vector<8x32xf32>
    %36 = arith.mulf %34, %35 : vector<8x32xf32>
    %c0_16 = arith.constant 0 : index
    %c0_17 = arith.constant 0 : index
    %37 = vector.load %arg1[%c0_16, %c0_17] : memref<8x32xf32, #tpu.memory_space<vmem>>, vector<8x32xf32>
    tpu.vector_store %arg1[%c0_16, %c0_17], %36 {strides = array<i32>} : memref<8x32xf32, #tpu.memory_space<vmem>>, vector<8x32xf32>,
    %cst_18 = arith.constant dense<0.000000e+00> : vector<32xf32>
    %38 = vector.multi_reduction <add>, %36, %cst_18 [0] : vector<8x32xf32> to vector<32xf32>
    %39 = vector.shape_cast %38 : vector<32xf32> to vector<1x32xf32>
    %cst_19 = arith.constant 0.000000e+00 : f32
    %40 = vector.broadcast %cst_19 : f32 to vector<1x32xf32>
    %41 = arith.cmpf ogt, %39, %40 : vector<1x32xf32>
    %42 = tpu.reciprocal %39 : vector<1x32xf32> -> vector<1x32xf32>
    %cst_20 = arith.constant 0.000000e+00 : f32
    %43 = vector.broadcast %cst_20 : f32 to vector<1x32xf32>
    %44 = arith.select %41, %42, %43 : vector<1x32xi1>, vector<1x32xf32>
    %cst_21 = arith.constant 3.125000e-02 : f32
    %45 = vector.broadcast %cst_21 : f32 to vector<1x32xf32>
    %46 = arith.mulf %44, %45 : vector<1x32xf32>
    %c0_22 = arith.constant 0 : index
    %c0_23 = arith.constant 0 : index
    %47 = vector.load %arg1[%c0_22, %c0_23] : memref<8x32xf32, #tpu.memory_space<vmem>>, vector<8x32xf32>
    %48 = vector.broadcast %46 : vector<1x32xf32> to vector<8x32xf32>
    %49 = arith.mulf %47, %48 : vector<8x32xf32>
    %cst_24 = arith.constant dense<0.000000e+00> : vector<8xf32>
    %50 = vector.multi_reduction <add>, %49, %cst_24 [1] : vector<8x32xf32> to vector<8xf32>
    %51 = vector.shape_cast %50 : vector<8xf32> to vector<8x1xf32>
    %cst_25 = arith.constant 0.000000e+00 : f32
    %52 = vector.broadcast %cst_25 : f32 to vector<8x1xf32>
    %53 = arith.cmpf ogt, %51, %52 : vector<8x1xf32>
    %54 = tpu.reciprocal %51 : vector<8x1xf32> -> vector<8x1xf32>
    %cst_26 = arith.constant 0.000000e+00 : f32
    %55 = vector.broadcast %cst_26 : f32 to vector<8x1xf32>
    %56 = arith.select %53, %54, %55 : vector<8x1xi1>, vector<8x1xf32>
    %cst_27 = arith.constant 1.250000e-01 : f32
    %57 = vector.broadcast %cst_27 : f32 to vector<8x1xf32>
    %58 = arith.mulf %56, %57 : vector<8x1xf32>
    %c0_28 = arith.constant 0 : index
    %c0_29 = arith.constant 0 : index
    %59 = vector.load %arg1[%c0_28, %c0_29] : memref<8x32xf32, #tpu.memory_space<vmem>>, vector<8x32xf32>
    %60 = vector.broadcast %46 : vector<1x32xf32> to vector<8x32xf32>
    %61 = arith.mulf %59, %60 : vector<8x32xf32>
    %62 = vector.broadcast %58 : vector<8x1xf32> to vector<8x32xf32>
    %63 = arith.mulf %61, %62 : vector<8x32xf32>
    %c0_30 = arith.constant 0 : index
    %c0_31 = arith.constant 0 : index
    %64 = vector.load %arg1[%c0_30, %c0_31] : memref<8x32xf32, #tpu.memory_space<vmem>>, vector<8x32xf32>
    tpu.vector_store %arg1[%c0_30, %c0_31], %63 {strides = array<i32>} : memref<8x32xf32, #tpu.memory_space<vmem>>, vector<8x32xf32>,
    %cst_32 = arith.constant dense<0.000000e+00> : vector<32xf32>
    %65 = vector.multi_reduction <add>, %63, %cst_32 [0] : vector<8x32xf32> to vector<32xf32>
    %66 = vector.shape_cast %65 : vector<32xf32> to vector<1x32xf32>
    %cst_33 = arith.constant 0.000000e+00 : f32
    %67 = vector.broadcast %cst_33 : f32 to vector<1x32xf32>
    %68 = arith.cmpf ogt, %66, %67 : vector<1x32xf32>
    %69 = tpu.reciprocal %66 : vector<1x32xf32> -> vector<1x32xf32>
    %cst_34 = arith.constant 0.000000e+00 : f32
    %70 = vector.broadcast %cst_34 : f32 to vector<1x32xf32>
    %71 = arith.select %68, %69, %70 : vector<1x32xi1>, vector<1x32xf32>
    %cst_35 = arith.constant 3.125000e-02 : f32
    %72 = vector.broadcast %cst_35 : f32 to vector<1x32xf32>
    %73 = arith.mulf %71, %72 : vector<1x32xf32>
    %c0_36 = arith.constant 0 : index
    %c0_37 = arith.constant 0 : index
    %74 = vector.load %arg1[%c0_36, %c0_37] : memref<8x32xf32, #tpu.memory_space<vmem>>, vector<8x32xf32>
    %75 = vector.broadcast %73 : vector<1x32xf32> to vector<8x32xf32>
    %76 = arith.mulf %74, %75 : vector<8x32xf32>
    %cst_38 = arith.constant dense<0.000000e+00> : vector<8xf32>
    %77 = vector.multi_reduction <add>, %76, %cst_38 [1] : vector<8x32xf32> to vector<8xf32>
    %78 = vector.shape_cast %77 : vector<8xf32> to vector<8x1xf32>
    %cst_39 = arith.constant 0.000000e+00 : f32
    %79 = vector.broadcast %cst_39 : f32 to vector<8x1xf32>
    %80 = arith.cmpf ogt, %78, %79 : vector<8x1xf32>
    %81 = tpu.reciprocal %78 : vector<8x1xf32> -> vector<8x1xf32>
    %cst_40 = arith.constant 0.000000e+00 : f32
    %82 = vector.broadcast %cst_40 : f32 to vector<8x1xf32>
    %83 = arith.select %80, %81, %82 : vector<8x1xi1>, vector<8x1xf32>
    %c0_41 = arith.constant 0 : index
    %c0_42 = arith.constant 0 : index
    %84 = vector.load %arg1[%c0_41, %c0_42] : memref<8x32xf32, #tpu.memory_space<vmem>>, vector<8x32xf32>
    %85 = vector.broadcast %73 : vector<1x32xf32> to vector<8x32xf32>
    %86 = arith.mulf %84, %85 : vector<8x32xf32>
    %87 = vector.broadcast %83 : vector<8x1xf32> to vector<8x32xf32>
    %88 = arith.mulf %86, %87 : vector<8x32xf32>
    %c0_43 = arith.constant 0 : index
    %c0_44 = arith.constant 0 : index
    %89 = vector.load %arg1[%c0_43, %c0_44] : memref<8x32xf32, #tpu.memory_space<vmem>>, vector<8x32xf32>
    tpu.vector_store %arg1[%c0_43, %c0_44], %88 {strides = array<i32>} : memref<8x32xf32, #tpu.memory_space<vmem>>, vector<8x32xf32>,
    return
  }
}

</mosaic_0001>

<llo_original>
// kernel: sinkhorn_knopp.1
$region0: #{sinkhorn_knopp.1}
  #allocation0 [shape = 'u32[]', space=smem, size = 0x4, offset = 0x4, fixed_abs, tag = 'smem constant byte address 0x4 - core index']
  #allocation1 [shape = 'u32[144,128]{1,0:T(1,128)}', space=vmem, size = 0x12000, scoped, tag = 'internal scratch']
  %s0 = inlined_call_operand.hbm [shape: f32[8,32], index: 0, kind: input, shape index: {}, may-alias: {0,1}]
  %s1 = inlined_call_operand.hbm [shape: f32[8,32], index: 1, kind: output, shape index: {}, may-alias: {0,1}]
  %s2 = sld [smem:[#allocation0]]
  $region18: #{sinkhorn_knopp.1} parent=0
    _
  %s4 = ssub.s32 1, %s2
  %s5 = scalar_select 0, %s4, %s2
  $region1: #{sinkhorn_knopp.1} parent=0
    #allocation2 [shape = 'u8[4096]{0}', space=vmem, size = 0x1000, scoped, tag = 'input window, operand 0, single buffered']
    #allocation3 [shape = 's32[1]{0}', space=sflag, size = 0x4, scoped, tag = 'scoped memory for sinkhorn_knopp.1']
    #allocation4 [shape = 's32[1]{0}', space=sflag, size = 0x4, scoped, tag = 'scoped memory for sinkhorn_knopp.1']
    #allocation5 [shape = 'u8[4096]{0}', space=vmem, size = 0x1000, scoped, tag = 'output window, operand 0, single buffered']
    %6 = vsyncpa [#allocation3], 0
    %7 = vsyncpa [#allocation4], 0
    // Predicated region
    $region2: #{sinkhorn_knopp.1} parent=1 // pred_check
      _
    $region3: #{sinkhorn_knopp.1} parent=1 // pred_check_branch
      %9 = sbr.rel (0) target = $region5
    $region4: #{sinkhorn_knopp.1} parent=1 // pred_region
      %s11 = ssub.s32 128, 128
      %12 = vsyncadd [#allocation3], %s11
      %s14 = sshll.u32 [#allocation2], 4
      %s15 = int_to_ptr.vmem [resolvable:$true] %s14
      %17 = dma.hbm_to_vmem [thread:$0]  %s0, 128, %s15, [#allocation3]
    $region5: #{sinkhorn_knopp.1} parent=1 // pred_fallthru
      _
    // Predicated region
    $region6: #{sinkhorn_knopp.1} parent=1 // pred_check
      _
    $region7: #{sinkhorn_knopp.1} parent=1 // pred_check_branch
      %19 = sbr.rel (0) target = $region9
    $region8: #{sinkhorn_knopp.1} parent=1 // pred_region
      %20 = dma.done [#allocation3], 128
    $region9: #{sinkhorn_knopp.1} parent=1 // pred_fallthru
      _
    %v21 = vld [vmem:[#allocation2] sm:$0xff]
    %vm22 = vcmask 261120
    %v23 = vsel %vm22, %v21, -inf
    %24 = vmax.xlane.f32.xlu0 %v23
    %v25 = vpop.xlane.xlu0 %24
    %v26 = vrot.slane %v25, 4
    %v27 = vmax.f32 %v25, %v26
    %v28 = vrot.slane %v27, 2
    %v29 = vmax.f32 %v27, %v28
    %v30 = vrot.slane %v29, 1
    %v31 = vmax.f32 %v29, %v30
    %s32 = vtos %v31
    %v33 = vstv %s32
    %v34 = vsub.f32 %v21, %v33
    %v35 = vmul.f32 %v34, 20.0
    %v36 = vmul.f32 %v35, 1.442695
    %v37 = vpow.pop %v36
    %38 = vst.msk [vmem:[#allocation5] sm:$0xff] %vm22, %v37
    %v39 = vsel %vm22, %v37, 0.0
    %v40 = vrot.slane %v39, 4
    %v41 = vadd.f32 %v39, %v40
    %v42 = vrot.slane %v41, 2
    %v43 = vadd.f32 %v41, %v42
    %v44 = vrot.slane %v43, 1
    %v45 = vadd.f32 %v43, %v44
    %vm46 = vcmp.gt.f32.partialorder %v45, 0.0
    %v47 = vrcp.pop %v45
    %v48 = vsel %vm46, %v47, 0.0
    %v49 = vmul.f32 %v48, 0.03125
    %v50 = vld [vmem:[#allocation5] sm:$0xff]
    %v51 = vmul.f32 %v50, %v49
    %v52 = vsel %vm22, %v51, 0.0
    %53 = vadd.xlane.f32.xlu0 %v52
    %v54 = vpop.xlane.xlu0 %53
    %vm55 = vcmp.gt.f32.partialorder %v54, 0.0
    %v56 = vrcp.pop %v54
    %v57 = vsel %vm55, %v56, 0.0
    %v58 = vmul.f32 %v57, 0.125
    %v59 = vmul.f32 %v51, %v58
    %60 = vst.msk [vmem:[#allocation5] sm:$0xff] %vm22, %v59
    %v61 = vsel %vm22, %v59, 0.0
    %v62 = vrot.slane %v61, 4
    %v63 = vadd.f32 %v61, %v62
    %v64 = vrot.slane %v63, 2
    %v65 = vadd.f32 %v63, %v64
    %v66 = vrot.slane %v65, 1
    %v67 = vadd.f32 %v65, %v66
    %vm68 = vcmp.gt.f32.partialorder %v67, 0.0
    %v69 = vrcp.pop %v67
    %v70 = vsel %vm68, %v69, 0.0
    %v71 = vmul.f32 %v70, 0.03125
    %v72 = vld [vmem:[#allocation5] sm:$0xff]
    %v73 = vmul.f32 %v72, %v71
    %v74 = vsel %vm22, %v73, 0.0
    %75 = vadd.xlane.f32.xlu0 %v74
    %v76 = vpop.xlane.xlu0 %75
    %vm77 = vcmp.gt.f32.partialorder %v76, 0.0
    %v78 = vrcp.pop %v76
    %v79 = vsel %vm77, %v78, 0.0
    %v80 = vmul.f32 %v79, 0.125
    %v81 = vmul.f32 %v73, %v80
    %82 = vst.msk [vmem:[#allocation5] sm:$0xff] %vm22, %v81
    %v83 = vsel %vm22, %v81, 0.0
    %v84 = vrot.slane %v83, 4
    %v85 = vadd.f32 %v83, %v84
    %v86 = vrot.slane %v85, 2
    %v87 = vadd.f32 %v85, %v86
    %v88 = vrot.slane %v87, 1
    %v89 = vadd.f32 %v87, %v88
    %vm90 = vcmp.gt.f32.partialorder %v89, 0.0
    %v91 = vrcp.pop %v89
    %v92 = vsel %vm90, %v91, 0.0
    %v93 = vmul.f32 %v92, 0.03125
    %v94 = vld [vmem:[#allocation5] sm:$0xff]
    %v95 = vmul.f32 %v94, %v93
    %v96 = vsel %vm22, %v95, 0.0
    %97 = vadd.xlane.f32.xlu0 %v96
    %v98 = vpop.xlane.xlu0 %97
    %vm99 = vcmp.gt.f32.partialorder %v98, 0.0
    %v100 = vrcp.pop %v98
    %v101 = vsel %vm99, %v100, 0.0
    %v102 = vmul.f32 %v95, %v101
    %103 = vst.msk [vmem:[#allocation5] sm:$0xff] %vm22, %v102
    // Predicated region
    $region10: #{sinkhorn_knopp.1} parent=1 // pred_check
      _
    $region11: #{sinkhorn_knopp.1} parent=1 // pred_check_branch
      %105 = sbr.rel (0) target = $region13
    $region12: #{sinkhorn_knopp.1} parent=1 // pred_region
      %s107 = ssub.s32 128, 128
      %108 = vsyncadd [#allocation4], %s107
      %s110 = sshll.u32 [#allocation5], 4
      %s111 = int_to_ptr.vmem [resolvable:$true] %s110
      %113 = dma.vmem_to_hbm [thread:$0]  %s111, 128, %s1, [#allocation4]
    $region13: #{sinkhorn_knopp.1} parent=1 // pred_fallthru
      _
    // Predicated region
    $region14: #{sinkhorn_knopp.1} parent=1 // pred_check
      _
    $region15: #{sinkhorn_knopp.1} parent=1 // pred_check_branch
      %115 = sbr.rel (0) target = $region17
    $region16: #{sinkhorn_knopp.1} parent=1 // pred_region
      %116 = dma.done [#allocation4], 128
    $region17: #{sinkhorn_knopp.1} parent=1 // pred_fallthru
      _
    %117 = vsyncpa [#allocation3], 1
    %118 = vsyncpa [#allocation4], 1

</llo_original>
